<compile_context>
chip_gen: v5e
topology: v5e:2x2
jax: 0.10.0
libtpu: 0.0.40
codegen_flags: <defaults>
</compile_context>

<pallas_src>
import functools
import math

import jax
import jax.numpy as jnp
from jax import lax
from jax.experimental import pallas as pl
from jax.experimental.pallas import tpu as pltpu

_INV_SQRT2 = 0.7071067811865476
_SQRT_2_OVER_PI = 0.7978845608028654


def _gelu(y, approx):
    if approx:
        # tanh approximation routes through the EUP slot (free when epilogue-bound)
        return 0.5 * y * (1.0 + jnp.tanh(_SQRT_2_OVER_PI * (y + 0.044715 * y * y * y)))
    # exact erf form: matches torch.nn.functional.gelu default
    return 0.5 * y * (1.0 + lax.erf(y * _INV_SQRT2))


def _fused_kernel(x_ref, w_ref, b_ref, o_ref, *, compute_dtype, approx):
    # x_ref: (tm, H)   w_ref: (tn, H)   b_ref: (1, tn)   o_ref: (tm, tn)
    acc = lax.dot_general(
        x_ref[...].astype(compute_dtype),
        w_ref[...].astype(compute_dtype),
        dimension_numbers=(((1,), (1,)), ((), ())),   # contract H of both operands
        preferred_element_type=jnp.float32,
    )
    acc = acc + b_ref[...].astype(jnp.float32)
    o_ref[...] = _gelu(acc, approx).astype(o_ref.dtype)


def _fused_kernel_ksplit(x_ref, w_ref, b_ref, o_ref, acc_ref, *, compute_dtype, approx):
    # Same as above but with the hidden (K) axis tiled on grid axis 2 and a
    # resident f32 accumulator scratch.
    k = pl.program_id(2)

    @pl.when(k == 0)
    def _init():
        acc_ref[...] = jnp.zeros_like(acc_ref)

    acc_ref[...] += lax.dot_general(
        x_ref[...].astype(compute_dtype),
        w_ref[...].astype(compute_dtype),
        dimension_numbers=(((1,), (1,)), ((), ())),
        preferred_element_type=jnp.float32,
    )

    @pl.when(k == pl.num_programs(2) - 1)
    def _finish():
        acc = acc_ref[...] + b_ref[...].astype(jnp.float32)
        o_ref[...] = _gelu(acc, approx).astype(o_ref.dtype)


def _sublane_multiple(dtype):
    # f32 -> 8, bf16/f16 -> 16, int8/fp8 -> 32 (sub-32-bit dtypes pack along sublanes)
    return max(8, 32 // jnp.dtype(dtype).itemsize)


def _pick_col_tile(n, pref):
    """Largest multiple-of-128 tile <= pref, preferring minimal ragged-edge waste."""
    pref = max(128, (pref // 128) * 128)
    best, best_waste = 128, None
    cand = pref
    while cand >= 128:
        waste = (-n) % cand
        if best_waste is None or waste < best_waste:
            best, best_waste = cand, waste
        if waste == 0:
            break
        cand -= 128
    return best


def protein_sge_intermediate(hidden_states, weight, bias, *, tm=512, tn=512,
                             tk_cap=2048, use_bf16_mxu=False, approx_gelu=False):
    """gelu(hidden_states @ weight.T + bias).

    hidden_states: (B, S, H); weight: (intermediate, H); bias: (intermediate,)
    """
    B, S, H = hidden_states.shape
    N, Hw = weight.shape
    assert Hw == H, "weight hidden dim mismatch"
    assert bias.shape == (N,), "bias shape mismatch"
    M = B * S

    x2d = hidden_states.reshape(M, H)   # trivial collapse, no copy
    b2d = bias.reshape(1, N)

    x_it = jnp.dtype(hidden_states.dtype).itemsize
    w_it = jnp.dtype(weight.dtype).itemsize
    b_it = jnp.dtype(bias.dtype).itemsize
    o_it = x_it
    sub = _sublane_multiple(hidden_states.dtype)
    compute_dtype = jnp.bfloat16 if use_bf16_mxu else hidden_states.dtype

    # Per-generation VMEM budget (v5e/v6e: 128 MiB, v7x: 64 MiB).
    try:
        vmem_cap = int(pltpu.get_tpu_info().vmem_capacity_bytes)
    except Exception:
        vmem_cap = 64 << 20
    budget = int(0.70 * vmem_cap)

    def vmem_need(tm_, tn_, tk_, with_acc):
        # double-buffered x / w / out tiles + sublane-padded bias tile (+ f32 accumulator)
        n = 2 * (tm_ * tk_ * x_it + tn_ * tk_ * w_it + tm_ * tn_ * o_it)
        n += 2 * 8 * tn_ * b_it
        if with_acc:
            n += tm_ * tn_ * 4
        return n

    # ---- row (M) tile: full dim if it fits, else sublane-aligned ----
    if M <= tm:
        tm_eff = M                     # full-dim block is always layout-legal
    else:
        tm_eff = max(sub, (tm // sub) * sub)

    tm_cands = []
    c = tm_eff
    while True:
        tm_cands.append(c)
        nxt = max(sub, ((c // 2) // sub) * sub)
        if nxt >= c or nxt < sub:
            break
        c = nxt

    # ---- preferred config: weight fully VMEM-resident (read from HBM exactly once) ----
    resident = False
    tn_eff, tk_eff = N, H
    for c in tm_cands:
        if vmem_need(c, N, H, False) <= budget:
            tm_eff, resident = c, True
            break

    if resident:
        if pl.cdiv(M, tm_eff) == 1 and N >= 256:
            # small-M call: split N so both TensorCores (v7x megacore) get work
            half = (N + 1) // 2
            cand = ((half + 127) // 128) * 128
            if cand < N:
                tn_eff = cand
    else:
        # ---- fallback: tile N (and H for very large hidden dims) ----
        tn_eff = N if N <= tn else _pick_col_tile(N, tn)
        tk_eff = H
        if H > tk_cap:
            for cand in range((tk_cap // 128) * 128, 127, -128):
                if H % cand == 0:      # K tiles must divide H exactly (no ragged-K garbage)
                    tk_eff = cand
                    break
        # shrink row / col tiles until the working set fits the budget
        while vmem_need(tm_eff, tn_eff, tk_eff, tk_eff < H) > budget and tm_eff >= 2 * sub:
            tm_eff = max(sub, ((tm_eff // 2) // sub) * sub)
        while (vmem_need(tm_eff, tn_eff, tk_eff, tk_eff < H) > budget
               and tn_eff >= 256 and tn_eff % 128 == 0):
            tn_eff = max(128, ((tn_eff // 2) // 128) * 128)

    gm = pl.cdiv(M, tm_eff)
    gn = pl.cdiv(N, tn_eff)
    gk = pl.cdiv(H, tk_eff)

    # Lead the grid with the larger parallel extent (megacore / dual-TC friendliness).
    swap = gn > gm

    if gk == 1:
        kernel = functools.partial(_fused_kernel, compute_dtype=compute_dtype,
                                   approx=approx_gelu)
        scratch_shapes = []
        dims = ("parallel", "parallel")
        if swap:
            grid = (gn, gm)
            x_map = lambda j, i: (i, 0)
            w_map = lambda j, i: (j, 0)
            b_map = lambda j, i: (0, j)
            o_map = lambda j, i: (i, j)
        else:
            grid = (gm, gn)
            x_map = lambda i, j: (i, 0)
            w_map = lambda i, j: (j, 0)
            b_map = lambda i, j: (0, j)
            o_map = lambda i, j: (i, j)
    else:
        kernel = functools.partial(_fused_kernel_ksplit, compute_dtype=compute_dtype,
                                   approx=approx_gelu)
        scratch_shapes = [pltpu.VMEM((tm_eff, tn_eff), jnp.float32)]
        dims = ("parallel", "parallel", "arbitrary")
        if swap:
            grid = (gn, gm, gk)
            x_map = lambda j, i, k: (i, k)
            w_map = lambda j, i, k: (j, k)
            b_map = lambda j, i, k: (0, j)
            o_map = lambda j, i, k: (i, j)
        else:
            grid = (gm, gn, gk)
            x_map = lambda i, j, k: (i, k)
            w_map = lambda i, j, k: (j, k)
            b_map = lambda i, j, k: (0, j)
            o_map = lambda i, j, k: (i, j)

    need = vmem_need(tm_eff, tn_eff, tk_eff, gk > 1)
    vmem_limit = int(min(max(need + (4 << 20), 32 << 20), int(0.85 * vmem_cap)))

    w_reads = 1 if resident else gm
    cost = pl.CostEstimate(
        flops=2 * M * H * N,
        transcendentals=M * N,
        bytes_accessed=(M * H * x_it + w_reads * N * H * w_it
                        + 8 * N * b_it + M * N * o_it),
    )

    out2d = pl.pallas_call(
        kernel,
        out_shape=jax.ShapeDtypeStruct((M, N), hidden_states.dtype),
        grid=grid,
        in_specs=[
            pl.BlockSpec((tm_eff, tk_eff), x_map),   # activation row panel
            pl.BlockSpec((tn_eff, tk_eff), w_map),   # weight, native nn.Linear (N, H) layout
            pl.BlockSpec((1, tn_eff), b_map),        # bias
        ],
        out_specs=pl.BlockSpec((tm_eff, tn_eff), o_map),
        scratch_shapes=scratch_shapes,
        compiler_params=pltpu.CompilerParams(
            dimension_semantics=dims,
            vmem_limit_bytes=vmem_limit,
        ),
        cost_estimate=cost,
    )(x2d, weight, b2d)

    return out2d.reshape(B, S, N)


def _reference(hidden_states, weight, bias):
    y = jnp.einsum("bsh,nh->bsn", hidden_states, weight,
                   precision=lax.Precision.HIGHEST) + bias
    return 0.5 * y * (1.0 + lax.erf(y * _INV_SQRT2))


if __name__ == "__main__":
    def _init(key, B, S, H, N, dtype=jnp.float32):
        kx, kw, kb = jax.random.split(key, 3)
        bound = 1.0 / math.sqrt(H)
        x = jax.random.normal(kx, (B, S, H), dtype=dtype)
        w = jax.random.uniform(kw, (N, H), minval=-bound, maxval=bound, dtype=dtype)
        b = jax.random.uniform(kb, (N,), minval=-bound, maxval=bound, dtype=dtype)
        return x, w, b

    k1, k2, k3 = jax.random.split(jax.random.PRNGKey(0), 3)

    # 1) module-sized config: hidden_size=32, intermediate_size=64 (single tile, resident weight)
    x, w, b = _init(k1, 2, 8, 32, 64)
    out = jax.block_until_ready(protein_sge_intermediate(x, w, b))
    assert out.shape == (2, 8, 64)
    assert jnp.allclose(out, _reference(x, w, b), atol=1e-4, rtol=1e-4), "mismatch (case 1)"

    # 2) ragged N edge + small-M call (grid led by the split N axis)
    x, w, b = _init(k2, 2, 96, 128, 320)
    out = jax.block_until_ready(protein_sge_intermediate(x, w, b))
    assert jnp.allclose(out, _reference(x, w, b), atol=1e-4, rtol=1e-4), "mismatch (case 2)"

    # 3) multiple M tiles (incl. ragged last tile) streaming against a VMEM-resident weight
    x, w, b = _init(k3, 4, 100, 64, 256)
    out = jax.block_until_ready(protein_sge_intermediate(x, w, b, tm=128))
    assert jnp.allclose(out, _reference(x, w, b), atol=1e-4, rtol=1e-4), "mismatch (case 3)"

    print("KERNEL_OK")
</pallas_src>

<mosaic_0001>
module attributes {stable_mosaic.version = 11 : i64} {
  func.func @_fused_kernel(%arg0: i32, %arg1: i32, %arg2: memref<16x32xf32, #tpu.memory_space<vmem>>, %arg3: memref<64x32xf32, #tpu.memory_space<vmem>>, %arg4: memref<1x64xf32, #tpu.memory_space<vmem>>, %arg5: memref<16x64xf32, #tpu.memory_space<vmem>>) attributes {dimension_semantics = [#tpu.dimension_semantics<parallel>, #tpu.dimension_semantics<parallel>], iteration_bounds = array<i64: 1, 1>, scalar_prefetch = 0 : i64, scratch_operands = 0 : i64, tpu.core_type = #tpu.core_type<tc>, window_params = [{transform_indices = @transform_0, window_bounds = array<i64: 16, 32>}, {transform_indices = @transform_1, window_bounds = array<i64: 64, 32>}, {transform_indices = @transform_2, window_bounds = array<i64: 1, 64>}, {transform_indices = @transform_3, window_bounds = array<i64: 16, 64>}]} {
    %c0 = arith.constant 0 : index
    %c0_0 = arith.constant 0 : index
    %0 = vector.load %arg2[%c0, %c0_0] : memref<16x32xf32, #tpu.memory_space<vmem>>, vector<16x32xf32>
    %c0_1 = arith.constant 0 : index
    %c0_2 = arith.constant 0 : index
    %1 = vector.load %arg3[%c0_1, %c0_2] : memref<64x32xf32, #tpu.memory_space<vmem>>, vector<64x32xf32>
    %cst = arith.constant dense<0.000000e+00> : vector<16x64xf32>
    %2 = tpu.matmul %0, %1, %cst {dimension_numbers = #tpu.dot_dimension_numbers<[1], [1], [0], [0], [0, 0, 1, 0], [], []>} : vector<16x32xf32>, vector<64x32xf32>, vector<16x64xf32> -> vector<16x64xf32>
    %c0_3 = arith.constant 0 : index
    %c0_4 = arith.constant 0 : index
    %3 = vector.load %arg4[%c0_3, %c0_4] : memref<1x64xf32, #tpu.memory_space<vmem>>, vector<1x64xf32>
    %4 = vector.broadcast %3 : vector<1x64xf32> to vector<16x64xf32>
    %5 = arith.addf %2, %4 : vector<16x64xf32>
    %cst_5 = arith.constant 5.000000e-01 : f32
    %6 = vector.broadcast %cst_5 : f32 to vector<16x64xf32>
    %7 = arith.mulf %6, %5 : vector<16x64xf32>
    %cst_6 = arith.constant 0.707106769 : f32
    %8 = vector.broadcast %cst_6 : f32 to vector<16x64xf32>
    %9 = arith.mulf %5, %8 : vector<16x64xf32>
    %10 = math.erf %9 : vector<16x64xf32>
    %cst_7 = arith.constant 1.000000e+00 : f32
    %11 = vector.broadcast %cst_7 : f32 to vector<16x64xf32>
    %12 = arith.addf %11, %10 : vector<16x64xf32>
    %13 = arith.mulf %7, %12 : vector<16x64xf32>
    %c0_8 = arith.constant 0 : index
    %c0_9 = arith.constant 0 : index
    %14 = vector.load %arg5[%c0_8, %c0_9] : memref<16x64xf32, #tpu.memory_space<vmem>>, vector<16x64xf32>
    tpu.vector_store %arg5[%c0_8, %c0_9], %13 {strides = array<i32>} : memref<16x64xf32, #tpu.memory_space<vmem>>, vector<16x64xf32>,
    return
  }
  func.func @transform_0(%arg0: i32, %arg1: i32) -> (i32, i32) {
    %c0_i32 = arith.constant 0 : i32
    %c0_i32_0 = arith.constant 0 : i32
    return %arg0, %c0_i32 : i32, i32
  }
  func.func @transform_1(%arg0: i32, %arg1: i32) -> (i32, i32) {
    %c0_i32 = arith.constant 0 : i32
    %c0_i32_0 = arith.constant 0 : i32
    return %arg1, %c0_i32 : i32, i32
  }
  func.func @transform_2(%arg0: i32, %arg1: i32) -> (i32, i32) {
    %c0_i32 = arith.constant 0 : i32
    %c0_i32_0 = arith.constant 0 : i32
    return %c0_i32, %arg1 : i32, i32
  }
  func.func @transform_3(%arg0: i32, %arg1: i32) -> (i32, i32) {
    %c0_i32 = arith.constant 0 : i32
    return %arg0, %arg1 : i32, i32
  }
}

</mosaic_0001>

<llo_original>
// kernel: tpu_custom_call.1
$region0: #{tpu_custom_call.1}
  #allocation0 [shape = 'u32[]', space=smem, size = 0x4, offset = 0x4, fixed_abs, tag = 'smem constant byte address 0x4 - core index']
  #allocation1 [shape = 'u32[72,128]{1,0:T(1,128)}', space=vmem, size = 0x9000, scoped, tag = 'internal scratch']
  %s0 = inlined_call_operand.vmem [shape: f32[16,32], index: 0, kind: input, shape index: {}]
  %s1 = inlined_call_operand.vmem [shape: f32[64,32], index: 1, kind: input, shape index: {}]
  %s2 = inlined_call_operand.vmem [shape: f32[1,64], index: 2, kind: input, shape index: {}]
  %s3 = inlined_call_operand.hbm [shape: f32[16,64], index: 3, kind: output, shape index: {}]
  %s4 = sld [smem:[#allocation0]]
  $region22: #{tpu_custom_call.1} parent=0
    _
  %s6 = ssub.s32 1, %s4
  %s7 = scalar_select 0, %s6, %s4
  $region1: #{tpu_custom_call.1} parent=0
    #allocation2 [shape = 'u8[8192]{0}', space=vmem, size = 0x2000, scoped, tag = 'output window, operand 0, single buffered']
    #allocation3 [shape = 's32[1]{0}', space=sflag, size = 0x4, scoped, tag = 'scoped memory for tpu_custom_call.1']
    %8 = vsyncpa [#allocation3], 0
    // Predicated region
    $region2: #{tpu_custom_call.1} parent=1 // pred_check
      _
    $region3: #{tpu_custom_call.1} parent=1 // pred_check_branch
      %10 = sbr.rel (0) target = $region5
    $region4: #{tpu_custom_call.1} parent=1 // pred_region
      _
    $region5: #{tpu_custom_call.1} parent=1 // pred_fallthru
      _
    // Predicated region
    $region6: #{tpu_custom_call.1} parent=1 // pred_check
      _
    $region7: #{tpu_custom_call.1} parent=1 // pred_check_branch
      %12 = sbr.rel (0) target = $region9
    $region8: #{tpu_custom_call.1} parent=1 // pred_region
      _
    $region9: #{tpu_custom_call.1} parent=1 // pred_fallthru
      _
    // Predicated region
    $region10: #{tpu_custom_call.1} parent=1 // pred_check
      _
    $region11: #{tpu_custom_call.1} parent=1 // pred_check_branch
      %14 = sbr.rel (0) target = $region13
    $region12: #{tpu_custom_call.1} parent=1 // pred_region
      _
    $region13: #{tpu_custom_call.1} parent=1 // pred_fallthru
      _
    %v15 = vld [vmem:[%s0] sm:$0xff]
    %v16 = vld [vmem:[%s0 + $0x8] sm:$0xff]
    %v17 = vld [vmem:[%s1] sm:$0xff]
    %v18 = vld [vmem:[%s1 + $0x8] sm:$0xff]
    %v19 = vld [vmem:[%s1 + $0x10] sm:$0xff]
    %v20 = vld [vmem:[%s1 + $0x18] sm:$0xff]
    %v21 = vld [vmem:[%s1 + $0x20] sm:$0xff]
    %v22 = vld [vmem:[%s1 + $0x28] sm:$0xff]
    %v23 = vld [vmem:[%s1 + $0x30] sm:$0xff]
    %v24 = vld [vmem:[%s1 + $0x38] sm:$0xff]
    %v25 = vld [vmem:[%s2] sm:$0x1]
    %v27 = vperm.slane %v25, 0
    %vm29 = vcmask 261120
    %v31 = vsel %vm29, %v15, 0
    %v34 = vsel %vm29, %v16, 0
    %v37 = vsel %vm29, %v17, 0
    %v40 = vsel %vm29, %v18, 0
    %v43 = vsel %vm29, %v19, 0
    %v46 = vsel %vm29, %v20, 0
    %v49 = vsel %vm29, %v21, 0
    %v52 = vsel %vm29, %v22, 0
    %v55 = vsel %vm29, %v23, 0
    %v58 = vsel %vm29, %v24, 0
    %60 = vmatpush.xpose.msra.mxu0 0.0
    %61 = vmatpush.xpose.msra.mxu0 0.0
    %62 = vmatpush.xpose.msra.mxu0 0.0
    %63 = vmatpush.xpose.msra.mxu0 0.0
    %64 = vmatpush.xpose.msra.mxu0 0.0
    %65 = vmatpush.xpose.msra.mxu0 0.0
    %66 = vmatpush.xpose.msra.mxu0 0.0
    %67 = vmatpush.xpose.msra.mxu0 0.0
    %68 = vmatpush.xpose.msra.mxu0 %v58
    %69 = vmatpush.xpose.msra.mxu0 %v55
    %70 = vmatpush.xpose.msra.mxu0 %v52
    %71 = vmatpush.xpose.msra.mxu0 %v49
    %72 = vmatpush.xpose.msra.mxu0 %v46
    %73 = vmatpush.xpose.msra.mxu0 %v43
    %74 = vmatpush.xpose.msra.mxu0 %v40
    %75 = vmatpush.xpose.msra.mxu0 %v37
    %76 = vmatmul.f32.gmra.mxu0 %v31
    %v77 = vpop.f32.mrf.mxu0
    %v78 = vadd.f32 %v27, %v77
    %79 = vmatmul.f32.gmra.mxu0 %v34
    %v80 = vpop.f32.mrf.mxu0
    %v81 = vadd.f32 %v27, %v80
    %82 = vdwg.mxu0
    %v83 = vmul.f32 %v78, 0.5
    %v84 = vmul.f32 %v81, 0.5
    %v85 = vmul.f32 %v78, 0.70710677
    %v86 = vmul.f32 %v81, 0.70710677
    %v87 = vmul.f32 %v85, %v85
    %v88 = vmin.f32 16.0, %v87
    %v89 = vmul.f32 %v88, 2.1237322e-06
    %v90 = vadd.f32 %v89, 0.00028619796
    %v91 = vmul.f32 %v88, %v90
    %v92 = vadd.f32 %v91, 0.0036580483
    %v93 = vmul.f32 %v88, %v92
    %v94 = vadd.f32 %v93, 0.05243302
    %v95 = vmul.f32 %v88, %v94
    %v96 = vadd.f32 %v95, 0.18741608
    %v97 = vmul.f32 %v88, %v96
    %v98 = vadd.f32 %v97, 1.1283791
    %v99 = vmul.f32 %v85, %v98
    %v100 = vmul.f32 %v88, 3.8918573e-05
    %v101 = vadd.f32 %v100, 0.001143296
    %v102 = vmul.f32 %v88, %v101
    %v103 = vadd.f32 %v102, 0.014752088
    %v104 = vmul.f32 %v88, %v103
    %v105 = vadd.f32 %v104, 0.112945676
    %v106 = vmul.f32 %v88, %v105
    %v107 = vadd.f32 %v106, 0.4994258
    %v108 = vmul.f32 %v88, %v107
    %v109 = vadd.f32 %v108, 1.0
    %v110 = vrcp.pop %v109
    %v111 = vmul.f32 %v109, %v110
    %v112 = vsub.f32 1.0, %v111
    %v113 = vmul.f32 %v110, %v112
    %v114 = vadd.f32 %v110, %v113
    %vm115 = vweird.f32 %v109
    %vm116 = vweird.f32 %v110
    %vm117 = vmor %vm115, %vm116
    %v118 = vsel %vm117, %v110, %v114
    %v119 = vand.u32 2147483647, %v109
    %vm120 = vcmp.eq.f32.partialorder %v119, 8.507059e+37
    %v121 = vand.u32 %v109, 2147483648
    %v122 = vor.u32 1.1754944e-38, %v121
    %v123 = vsel %vm120, %v122, %v118
    %v124 = vmul.f32 %v99, %v123
    %v125 = vmin.f32 %v124, 1.0
    %v126 = vmax.f32 %v125, -1.0
    %v127 = vmul.f32 %v86, %v86
    %v128 = vmin.f32 16.0, %v127
    %v129 = vmul.f32 %v128, 2.1237322e-06
    %v130 = vadd.f32 %v129, 0.00028619796
    %v131 = vmul.f32 %v128, %v130
    %v132 = vadd.f32 %v131, 0.0036580483
    %v133 = vmul.f32 %v128, %v132
    %v134 = vadd.f32 %v133, 0.05243302
    %v135 = vmul.f32 %v128, %v134
    %v136 = vadd.f32 %v135, 0.18741608
    %v137 = vmul.f32 %v128, %v136
    %v138 = vadd.f32 %v137, 1.1283791
    %v139 = vmul.f32 %v86, %v138
    %v140 = vmul.f32 %v128, 3.8918573e-05
    %v141 = vadd.f32 %v140, 0.001143296
    %v142 = vmul.f32 %v128, %v141
    %v143 = vadd.f32 %v142, 0.014752088
    %v144 = vmul.f32 %v128, %v143
    %v145 = vadd.f32 %v144, 0.112945676
    %v146 = vmul.f32 %v128, %v145
    %v147 = vadd.f32 %v146, 0.4994258
    %v148 = vmul.f32 %v128, %v147
    %v149 = vadd.f32 %v148, 1.0
    %v150 = vrcp.pop %v149
    %v151 = vmul.f32 %v149, %v150
    %v152 = vsub.f32 1.0, %v151
    %v153 = vmul.f32 %v150, %v152
    %v154 = vadd.f32 %v150, %v153
    %vm155 = vweird.f32 %v149
    %vm156 = vweird.f32 %v150
    %vm157 = vmor %vm155, %vm156
    %v158 = vsel %vm157, %v150, %v154
    %v159 = vand.u32 2147483647, %v149
    %vm160 = vcmp.eq.f32.partialorder %v159, 8.507059e+37
    %v161 = vand.u32 %v149, 2147483648
    %v162 = vor.u32 1.1754944e-38, %v161
    %v163 = vsel %vm160, %v162, %v158
    %v164 = vmul.f32 %v139, %v163
    %v165 = vmin.f32 %v164, 1.0
    %v166 = vmax.f32 %v165, -1.0
    %v167 = vadd.f32 %v126, 1.0
    %v168 = vadd.f32 %v166, 1.0
    %v169 = vmul.f32 %v83, %v167
    %v170 = vmul.f32 %v84, %v168
    %vm171 = vcmask 523264
    %172 = vst.msk [vmem:[#allocation2] sm:$0xff] %vm171, %v169
    %173 = vst.msk [vmem:[#allocation2 + $0x8] sm:$0xff] %vm171, %v170
    // Predicated region
    $region14: #{tpu_custom_call.1} parent=1 // pred_check
      _
    $region15: #{tpu_custom_call.1} parent=1 // pred_check_branch
      %175 = sbr.rel (0) target = $region17
    $region16: #{tpu_custom_call.1} parent=1 // pred_region
      %177 = vsyncadd [#allocation3], 0
      %s178 = sshll.u32 [#allocation2], 4
      %s179 = int_to_ptr.vmem [resolvable:$true] %s178
      %s180 = sshll.u32 %s3, 4
      %s181 = int_to_ptr.hbm [resolvable:$true] %s180
      %186 = dma.vmem_to_hbm [thread:$0]  %s179, 256, %s181, [#allocation3], 128, 128, 8
    $region17: #{tpu_custom_call.1} parent=1 // pred_fallthru
      _
    // Predicated region
    $region18: #{tpu_custom_call.1} parent=1 // pred_check
      _
    $region19: #{tpu_custom_call.1} parent=1 // pred_check_branch
      %188 = sbr.rel (0) target = $region21
    $region20: #{tpu_custom_call.1} parent=1 // pred_region
      %190 = dma.done [#allocation3], 256
    $region21: #{tpu_custom_call.1} parent=1 // pred_fallthru
      _
    %191 = vsyncpa [#allocation3], 1

</llo_original>
